<compile_context>
chip_gen: v7x
topology: tpu7x:2x2x1
jax: 0.10.0
libtpu: 0.0.40
codegen_flags: <defaults>
</compile_context>

<pallas_src>
import jax
import jax.numpy as jnp
from jax.experimental import pallas as pl
from jax.experimental.pallas import tpu as pltpu

INPUT_DIM = 7
H1 = 32
H2 = 16
BN_EPS = 1e-5


def fnn_kernel(x_ref,          # (7, TN)   input tile, batch on lanes
               w1_ref, b1_ref,  # (32, 7), (32, 1)   BN-folded layer 1
               w2_ref, b2_ref,  # (16, 32), (16, 1)  BN-folded layer 2
               w3_ref, b3_ref,  # (16, 1), (1, 1)    output layer
               o_ref):          # (1, TN)   lane-dense logits
    x = x_ref[...]                                                    # (7, TN)

    # Layer 1: folded Linear+BN, then ReLU (Dropout = identity at inference)
    h = jnp.dot(w1_ref[...], x, preferred_element_type=jnp.float32)   # (32, TN)
    h = jnp.maximum(h + b1_ref[...], 0.0)

    # Layer 2: folded Linear+BN, then ReLU
    h = jnp.dot(w2_ref[...], h, preferred_element_type=jnp.float32)   # (16, TN)
    h = jnp.maximum(h + b2_ref[...], 0.0)

    # Output layer 16 -> 1: VPU multiply + sublane reduction (lane-dense row)
    o = jnp.sum(h * w3_ref[...], axis=0, keepdims=True)               # (1, TN)
    o_ref[...] = o + b3_ref[...]


def _fold_bn(w, b, gamma, beta, mean, var):
    """Fold BatchNorm (running stats) into a Linear layer. w: (out,in), b: (out,)."""
    scale = gamma / jnp.sqrt(var + BN_EPS)                  # (out,)
    w_f = w * scale[:, None]                                # (out, in)
    b_f = scale * b + (beta - mean * scale)                 # (out,)
    return w_f, b_f


def flood_nn_forward(x, params, *, tile_n=512):
    """x: (N, INPUT_DIM) float32. Returns logits of shape (N,)."""
    N, D = x.shape
    assert D == INPUT_DIM
    (w1, b1, g1, be1, m1, v1,
     w2, b2, g2, be2, m2, v2,
     w3, b3) = params

    # Host-side BN folding.
    w1f, b1f = _fold_bn(w1, b1, g1, be1, m1, v1)            # (32,7), (32,)
    w2f, b2f = _fold_bn(w2, b2, g2, be2, m2, v2)            # (16,32), (16,)

    b1c = b1f[:, None]                                      # (32, 1)
    b2c = b2f[:, None]                                      # (16, 1)
    w3c = w3.T                                              # (16, 1)
    b3c = b3[None, :]                                       # (1, 1)

    # Batch on lanes; pad batch to a multiple of tile_n (no divisibility assert).
    n_blocks = pl.cdiv(N, tile_n)
    n_pad = n_blocks * tile_n
    xt = jnp.pad(x.T.astype(jnp.float32), ((0, 0), (0, n_pad - N)))   # (7, N_pad)

    full = lambda shape: pl.BlockSpec(shape, lambda i: (0, 0))

    out = pl.pallas_call(
        fnn_kernel,
        out_shape=jax.ShapeDtypeStruct((1, n_pad), jnp.float32),
        grid_spec=pl.GridSpec(
            grid=(n_blocks,),
            in_specs=[
                pl.BlockSpec((INPUT_DIM, tile_n), lambda i: (0, i)),  # x tile
                full((H1, INPUT_DIM)), full((H1, 1)),                 # W1', b1'
                full((H2, H1)), full((H2, 1)),                        # W2', b2'
                full((H2, 1)), full((1, 1)),                          # W3^T, b3
            ],
            out_specs=pl.BlockSpec((1, tile_n), lambda i: (0, i)),
        ),
        compiler_params=pltpu.CompilerParams(
            dimension_semantics=("parallel",)),
    )(xt, w1f, b1c, w2f, b2c, w3c, b3c)

    return out[0, :N]  # drop padding, squeeze(dim=-1)


def init_params(key):
    """Deterministic synthetic parameters matching the PyTorch module (inference)."""
    ks = jax.random.split(key, 14)

    def linear(kw, kb, din, dout):
        bound = 1.0 / jnp.sqrt(din)
        w = jax.random.uniform(kw, (dout, din), jnp.float32, -bound, bound)
        b = jax.random.uniform(kb, (dout,), jnp.float32, -bound, bound)
        return w, b

    def bn(kg, kb, km, kv, dim):
        gamma = 1.0 + 0.1 * jax.random.normal(kg, (dim,), jnp.float32)
        beta = 0.1 * jax.random.normal(kb, (dim,), jnp.float32)
        mean = 0.1 * jax.random.normal(km, (dim,), jnp.float32)
        var = jnp.abs(jax.random.normal(kv, (dim,), jnp.float32)) + 0.5
        return gamma, beta, mean, var

    w1, b1 = linear(ks[0], ks[1], INPUT_DIM, H1)
    g1, be1, m1, v1 = bn(ks[2], ks[3], ks[4], ks[5], H1)
    w2, b2 = linear(ks[6], ks[7], H1, H2)
    g2, be2, m2, v2 = bn(ks[8], ks[9], ks[10], ks[11], H2)
    w3, b3 = linear(ks[12], ks[13], H2, 1)

    return (w1, b1, g1, be1, m1, v1,
            w2, b2, g2, be2, m2, v2,
            w3, b3)


def reference_forward(x, params):
    """Pure-JAX reference with explicit (unfolded) BatchNorm, matching PyTorch eval()."""
    (w1, b1, g1, be1, m1, v1,
     w2, b2, g2, be2, m2, v2,
     w3, b3) = params
    h = x @ w1.T + b1
    h = (h - m1) / jnp.sqrt(v1 + BN_EPS) * g1 + be1
    h = jnp.maximum(h, 0.0)
    h = h @ w2.T + b2
    h = (h - m2) / jnp.sqrt(v2 + BN_EPS) * g2 + be2
    h = jnp.maximum(h, 0.0)
    return (h @ w3.T + b3)[:, 0]


if __name__ == "__main__":
    key = jax.random.PRNGKey(0)
    k_param, k_x = jax.random.split(key)

    # Small demo batch; not a multiple of tile_n on purpose (wrapper pads).
    N = 1000
    x = jax.random.normal(k_x, (N, INPUT_DIM), jnp.float32)
    params = init_params(k_param)

    logits = flood_nn_forward(x, params, tile_n=512)
    logits = jax.block_until_ready(logits)

    ref = reference_forward(x, params)
    assert logits.shape == (N,)
    assert jnp.allclose(logits, ref, atol=1e-5, rtol=1e-5), "mismatch vs reference"

    print("KERNEL_OK")
</pallas_src>

<mosaic_0001>
module attributes {stable_mosaic.version = 11 : i64} {
  func.func @fnn_kernel(%arg0: i32, %arg1: memref<7x512xf32, #tpu.memory_space<vmem>>, %arg2: memref<32x7xf32, #tpu.memory_space<vmem>>, %arg3: memref<32x1xf32, #tpu.memory_space<vmem>>, %arg4: memref<16x32xf32, #tpu.memory_space<vmem>>, %arg5: memref<16x1xf32, #tpu.memory_space<vmem>>, %arg6: memref<16x1xf32, #tpu.memory_space<vmem>>, %arg7: memref<1x1xf32, #tpu.memory_space<vmem>>, %arg8: memref<1x512xf32, #tpu.memory_space<vmem>>) attributes {dimension_semantics = [#tpu.dimension_semantics<parallel>], iteration_bounds = array<i64: 2>, scalar_prefetch = 0 : i64, scratch_operands = 0 : i64, tpu.core_type = #tpu.core_type<tc>, window_params = [{transform_indices = @transform_0, window_bounds = array<i64: 7, 512>}, {pipeline_mode = #tpu.pipeline_mode<synchronous>, transform_indices = @transform_1, window_bounds = array<i64: 32, 7>}, {pipeline_mode = #tpu.pipeline_mode<synchronous>, transform_indices = @transform_2, window_bounds = array<i64: 32, 1>}, {pipeline_mode = #tpu.pipeline_mode<synchronous>, transform_indices = @transform_3, window_bounds = array<i64: 16, 32>}, {pipeline_mode = #tpu.pipeline_mode<synchronous>, transform_indices = @transform_4, window_bounds = array<i64: 16, 1>}, {pipeline_mode = #tpu.pipeline_mode<synchronous>, transform_indices = @transform_5, window_bounds = array<i64: 16, 1>}, {pipeline_mode = #tpu.pipeline_mode<synchronous>, transform_indices = @transform_6, window_bounds = array<i64: 1, 1>}, {transform_indices = @transform_7, window_bounds = array<i64: 1, 512>}]} {
    %c0 = arith.constant 0 : index
    %c0_0 = arith.constant 0 : index
    %0 = vector.load %arg1[%c0, %c0_0] : memref<7x512xf32, #tpu.memory_space<vmem>>, vector<7x512xf32>
    %c0_1 = arith.constant 0 : index
    %c0_2 = arith.constant 0 : index
    %1 = vector.load %arg2[%c0_1, %c0_2] : memref<32x7xf32, #tpu.memory_space<vmem>>, vector<32x7xf32>
    %cst = arith.constant dense<0.000000e+00> : vector<32x512xf32>
    %2 = tpu.matmul %1, %0, %cst {dimension_numbers = #tpu.dot_dimension_numbers<[1], [0], [0], [1], [0, 0, 1, 1], [], []>} : vector<32x7xf32>, vector<7x512xf32>, vector<32x512xf32> -> vector<32x512xf32>
    %c0_3 = arith.constant 0 : index
    %c0_4 = arith.constant 0 : index
    %3 = vector.load %arg3[%c0_3, %c0_4] : memref<32x1xf32, #tpu.memory_space<vmem>>, vector<32x1xf32>
    %4 = vector.broadcast %3 : vector<32x1xf32> to vector<32x512xf32>
    %5 = arith.addf %2, %4 : vector<32x512xf32>
    %cst_5 = arith.constant 0.000000e+00 : f32
    %6 = vector.broadcast %cst_5 : f32 to vector<32x512xf32>
    %7 = arith.maximumf %5, %6 : vector<32x512xf32>
    %c0_6 = arith.constant 0 : index
    %c0_7 = arith.constant 0 : index
    %8 = vector.load %arg4[%c0_6, %c0_7] : memref<16x32xf32, #tpu.memory_space<vmem>>, vector<16x32xf32>
    %cst_8 = arith.constant dense<0.000000e+00> : vector<16x512xf32>
    %9 = tpu.matmul %8, %7, %cst_8 {dimension_numbers = #tpu.dot_dimension_numbers<[1], [0], [0], [1], [0, 0, 1, 1], [], []>} : vector<16x32xf32>, vector<32x512xf32>, vector<16x512xf32> -> vector<16x512xf32>
    %c0_9 = arith.constant 0 : index
    %c0_10 = arith.constant 0 : index
    %10 = vector.load %arg5[%c0_9, %c0_10] : memref<16x1xf32, #tpu.memory_space<vmem>>, vector<16x1xf32>
    %11 = vector.broadcast %10 : vector<16x1xf32> to vector<16x512xf32>
    %12 = arith.addf %9, %11 : vector<16x512xf32>
    %cst_11 = arith.constant 0.000000e+00 : f32
    %13 = vector.broadcast %cst_11 : f32 to vector<16x512xf32>
    %14 = arith.maximumf %12, %13 : vector<16x512xf32>
    %c0_12 = arith.constant 0 : index
    %c0_13 = arith.constant 0 : index
    %15 = vector.load %arg6[%c0_12, %c0_13] : memref<16x1xf32, #tpu.memory_space<vmem>>, vector<16x1xf32>
    %16 = vector.broadcast %15 : vector<16x1xf32> to vector<16x512xf32>
    %17 = arith.mulf %14, %16 : vector<16x512xf32>
    %cst_14 = arith.constant dense<0.000000e+00> : vector<512xf32>
    %18 = vector.multi_reduction <add>, %17, %cst_14 [0] : vector<16x512xf32> to vector<512xf32>
    %19 = vector.shape_cast %18 : vector<512xf32> to vector<1x512xf32>
    %c0_15 = arith.constant 0 : index
    %c0_16 = arith.constant 0 : index
    %20 = vector.load %arg7[%c0_15, %c0_16] : memref<1x1xf32, #tpu.memory_space<vmem>>, vector<1x1xf32>
    %21 = vector.broadcast %20 : vector<1x1xf32> to vector<1x512xf32>
    %22 = arith.addf %19, %21 : vector<1x512xf32>
    %c0_17 = arith.constant 0 : index
    %c0_18 = arith.constant 0 : index
    %23 = vector.load %arg8[%c0_17, %c0_18] : memref<1x512xf32, #tpu.memory_space<vmem>>, vector<1x512xf32>
    tpu.vector_store %arg8[%c0_17, %c0_18], %22 {strides = array<i32>} : memref<1x512xf32, #tpu.memory_space<vmem>>, vector<1x512xf32>,
    return
  }
  func.func @transform_0(%arg0: i32) -> (i32, i32) {
    %c0_i32 = arith.constant 0 : i32
    %c0_i32_0 = arith.constant 0 : i32
    return %c0_i32, %arg0 : i32, i32
  }
  func.func @transform_1(%arg0: i32) -> (i32, i32) {
    %c0_i32 = arith.constant 0 : i32
    %c0_i32_0 = arith.constant 0 : i32
    %c0_i32_1 = arith.constant 0 : i32
    return %c0_i32, %c0_i32_0 : i32, i32
  }
  func.func @transform_2(%arg0: i32) -> (i32, i32) {
    %c0_i32 = arith.constant 0 : i32
    %c0_i32_0 = arith.constant 0 : i32
    %c0_i32_1 = arith.constant 0 : i32
    return %c0_i32, %c0_i32_0 : i32, i32
  }
  func.func @transform_3(%arg0: i32) -> (i32, i32) {
    %c0_i32 = arith.constant 0 : i32
    %c0_i32_0 = arith.constant 0 : i32
    %c0_i32_1 = arith.constant 0 : i32
    return %c0_i32, %c0_i32_0 : i32, i32
  }
  func.func @transform_4(%arg0: i32) -> (i32, i32) {
    %c0_i32 = arith.constant 0 : i32
    %c0_i32_0 = arith.constant 0 : i32
    %c0_i32_1 = arith.constant 0 : i32
    return %c0_i32, %c0_i32_0 : i32, i32
  }
  func.func @transform_5(%arg0: i32) -> (i32, i32) {
    %c0_i32 = arith.constant 0 : i32
    %c0_i32_0 = arith.constant 0 : i32
    %c0_i32_1 = arith.constant 0 : i32
    return %c0_i32, %c0_i32_0 : i32, i32
  }
  func.func @transform_6(%arg0: i32) -> (i32, i32) {
    %c0_i32 = arith.constant 0 : i32
    %c0_i32_0 = arith.constant 0 : i32
    %c0_i32_1 = arith.constant 0 : i32
    return %c0_i32, %c0_i32_0 : i32, i32
  }
  func.func @transform_7(%arg0: i32) -> (i32, i32) {
    %c0_i32 = arith.constant 0 : i32
    %c0_i32_0 = arith.constant 0 : i32
    return %c0_i32, %arg0 : i32, i32
  }
}

</mosaic_0001>

<llo_original>
// kernel: tpu_custom_call.1
$region0: #{tpu_custom_call.1}
  #allocation0 [shape = 'u32[]', space=smem, size = 0x4, offset = 0x4, fixed_abs, tag = 'smem constant byte address 0x4 - core index']
  #allocation1 [shape = 'u32[144,128]{1,0:T(1,128)}', space=vmem, size = 0x12000, scoped, tag = 'internal scratch']
  #allocation2 [shape = 'f32[1,1]{1,0:T(1,128)S(1)}', space=vmem, size = 0x200, scoped, tag = 'scoped memory for tpu_custom_call.1']
  %s0 = inlined_call_operand.vmem [shape: f32[7,1024], index: 0, kind: input, shape index: {}]
  %s1 = inlined_call_operand.vmem [shape: f32[32,7], index: 1, kind: input, shape index: {}]
  %s2 = inlined_call_operand.vmem [shape: f32[32,1], index: 2, kind: input, shape index: {}]
  %s3 = inlined_call_operand.vmem [shape: f32[16,32], index: 3, kind: input, shape index: {}]
  %s4 = inlined_call_operand.vmem [shape: f32[16,1], index: 4, kind: input, shape index: {}]
  %s5 = inlined_call_operand.vmem [shape: f32[16,1], index: 5, kind: input, shape index: {}]
  %s6 = inlined_call_operand.<no memory space> [shape: f32[1,1], index: 6, kind: input, shape index: {}]
  %s7 = inlined_call_operand.hbm [shape: f32[1,1024], index: 7, kind: output, shape index: {}]
  %s8 = sld [smem:[#allocation0]]
  $region61: #{tpu_custom_call.1} parent=0
    _
  %s10 = ssub.s32 1, %s8
  %s11 = scalar_select 0, %s10, %s8
  %v12 = vstv %s6
  %13 = vst [vmem:[#allocation2] sm:$0x1] %v12
  $region1: #{tpu_custom_call.1} parent=0
    #allocation3 [shape = 'u8[4096]{0}', space=vmem, size = 0x1000, scoped, tag = 'output window, operand 0']
    #allocation4 [shape = 's32[2]{0}', space=sflag, size = 0x8, scoped, tag = 'scoped memory for tpu_custom_call.1']
    %14 = vsyncpa [#allocation4], 0
    %s15 = scalar_lea.sflag [#allocation4], 1
    %16 = vsyncpa %s15, 0
    loop: start=0, step=1, limit=4
    $region2: #{tpu_custom_call.1} parent=1 // loop_pre_header
      _
    $region3: #{tpu_custom_call.1} parent=1 // loop_header
      %s18 = sphi 0, %s22
      %p19 = scmp.ge.s32.totalorder %s18, 4
      %s28 = sphi 0, %s30
      %s31 = sphi 0, %s28
      %s32 = sphi 0, %s31
      %s48 = sphi 0, %s32
      %s52 = sphi 0, %s52
      %s54 = sphi 0, %s52
      %s55 = sphi 0, %s54
      %s69 = sphi 0, %s55
      %s73 = sphi 0, %s73
      %s75 = sphi 0, %s73
      %s76 = sphi 0, %s75
      %s90 = sphi 0, %s76
      %s94 = sphi 0, %s94
      %s96 = sphi 0, %s94
      %s97 = sphi 0, %s96
      %s111 = sphi 0, %s97
      %s115 = sphi 0, %s115
      %s117 = sphi 0, %s115
      %s118 = sphi 0, %s117
      %s132 = sphi 0, %s118
      %s136 = sphi 0, %s136
      %s138 = sphi 0, %s136
      %s139 = sphi 0, %s138
      %s153 = sphi 0, %s139
      %s157 = sphi 0, %s157
      %s159 = sphi 0, %s157
      %s160 = sphi 0, %s159
      %s174 = sphi 0, %s160
      %s180 = sphi 0, %s182
      %s183 = sphi 0, %s180
      %s184 = sphi 0, %s183
      %s200 = sphi 0, %s184
    $region4: #{tpu_custom_call.1} parent=1 // loop_header_branch
      %21 = sbr.rel (%p19) target = $region8
    $region5: #{tpu_custom_call.1} parent=1 // loop_body
      %s23 = ssub.s32 %s18, 1
      %s24 = ssub.s32 %s18, 2
      %s25 = sadd.s32 %s18, 1
      %s26 = ssub.s32 %s18, %s25
      %p27 = scmp.eq.s32.totalorder %s26, 0
      %s29 = sadd.s32 %s28, 1
      %s30 = scalar_select %p27, %s28, %s29
      %p33 = pneg %p27
      %p34 = scmp.eq.s32.totalorder %s18, 1
      %p35 = por %p33, %p34
      %p36 = scmp.ne.s32.totalorder %s28, %s31
      %p37 = scmp.eq.s32.totalorder %s18, 0
      %p38 = por %p36, %p37
      %p39 = scmp.ne.s32.totalorder %s28, %s31
      %p40 = scmp.eq.s32.totalorder %s23, 1
      %p41 = por %p39, %p40
      %p42 = scmp.ne.s32.totalorder %s31, %s32
      %p43 = scmp.eq.s32.totalorder %s23, 0
      %p44 = por %p42, %p43
      %p45 = scmp.ne.s32.totalorder %s31, %s32
      %p46 = scmp.eq.s32.totalorder %s24, 1
      %p47 = por %p45, %p46
      %p49 = scmp.ne.s32.totalorder %s32, %s48
      %p50 = scmp.eq.s32.totalorder %s24, 0
      %p51 = por %p49, %p50
      %s53 = sadd.s32 %s52, 1
      %p56 = scmp.eq.s32.totalorder %s18, 1
      %p57 = scmp.ne.s32.totalorder %s52, %s54
      %p58 = scmp.eq.s32.totalorder %s18, 0
      %p59 = por %p57, %p58
      %p60 = scmp.ne.s32.totalorder %s52, %s54
      %p61 = scmp.eq.s32.totalorder %s23, 1
      %p62 = por %p60, %p61
      %p63 = scmp.ne.s32.totalorder %s54, %s55
      %p64 = scmp.eq.s32.totalorder %s23, 0
      %p65 = por %p63, %p64
      %p66 = scmp.ne.s32.totalorder %s54, %s55
      %p67 = scmp.eq.s32.totalorder %s24, 1
      %p68 = por %p66, %p67
      %p70 = scmp.ne.s32.totalorder %s55, %s69
      %p71 = scmp.eq.s32.totalorder %s24, 0
      %p72 = por %p70, %p71
      %s74 = sadd.s32 %s73, 1
      %p77 = scmp.eq.s32.totalorder %s18, 1
      %p78 = scmp.ne.s32.totalorder %s73, %s75
      %p79 = scmp.eq.s32.totalorder %s18, 0
      %p80 = por %p78, %p79
      %p81 = scmp.ne.s32.totalorder %s73, %s75
      %p82 = scmp.eq.s32.totalorder %s23, 1
      %p83 = por %p81, %p82
      %p84 = scmp.ne.s32.totalorder %s75, %s76
      %p85 = scmp.eq.s32.totalorder %s23, 0
      %p86 = por %p84, %p85
      %p87 = scmp.ne.s32.totalorder %s75, %s76
      %p88 = scmp.eq.s32.totalorder %s24, 1
      %p89 = por %p87, %p88
      %p91 = scmp.ne.s32.totalorder %s76, %s90
      %p92 = scmp.eq.s32.totalorder %s24, 0
      %p93 = por %p91, %p92
      %s95 = sadd.s32 %s94, 1
      %p98 = scmp.eq.s32.totalorder %s18, 1
      %p99 = scmp.ne.s32.totalorder %s94, %s96
      %p100 = scmp.eq.s32.totalorder %s18, 0
      %p101 = por %p99, %p100
      %p102 = scmp.ne.s32.totalorder %s94, %s96
      %p103 = scmp.eq.s32.totalorder %s23, 1
      %p104 = por %p102, %p103
      %p105 = scmp.ne.s32.totalorder %s96, %s97
      %p106 = scmp.eq.s32.totalorder %s23, 0
      %p107 = por %p105, %p106
      %p108 = scmp.ne.s32.totalorder %s96, %s97
      %p109 = scmp.eq.s32.totalorder %s24, 1
      %p110 = por %p108, %p109
      %p112 = scmp.ne.s32.totalorder %s97, %s111
      %p113 = scmp.eq.s32.totalorder %s24, 0
      %p114 = por %p112, %p113
      %s116 = sadd.s32 %s115, 1
      %p119 = scmp.eq.s32.totalorder %s18, 1
      %p120 = scmp.ne.s32.totalorder %s115, %s117
      %p121 = scmp.eq.s32.totalorder %s18, 0
      %p122 = por %p120, %p121
      %p123 = scmp.ne.s32.totalorder %s115, %s117
      %p124 = scmp.eq.s32.totalorder %s23, 1
      %p125 = por %p123, %p124
      %p126 = scmp.ne.s32.totalorder %s117, %s118
      %p127 = scmp.eq.s32.totalorder %s23, 0
      %p128 = por %p126, %p127
      %p129 = scmp.ne.s32.totalorder %s117, %s118
      %p130 = scmp.eq.s32.totalorder %s24, 1
      %p131 = por %p129, %p130
      %p133 = scmp.ne.s32.totalorder %s118, %s132
      %p134 = scmp.eq.s32.totalorder %s24, 0
      %p135 = por %p133, %p134
      %s137 = sadd.s32 %s136, 1
      %p140 = scmp.eq.s32.totalorder %s18, 1
      %p141 = scmp.ne.s32.totalorder %s136, %s138
      %p142 = scmp.eq.s32.totalorder %s18, 0
      %p143 = por %p141, %p142
      %p144 = scmp.ne.s32.totalorder %s136, %s138
      %p145 = scmp.eq.s32.totalorder %s23, 1
      %p146 = por %p144, %p145
      %p147 = scmp.ne.s32.totalorder %s138, %s139
      %p148 = scmp.eq.s32.totalorder %s23, 0
      %p149 = por %p147, %p148
      %p150 = scmp.ne.s32.totalorder %s138, %s139
      %p151 = scmp.eq.s32.totalorder %s24, 1
      %p152 = por %p150, %p151
      %p154 = scmp.ne.s32.totalorder %s139, %s153
      %p155 = scmp.eq.s32.totalorder %s24, 0
      %p156 = por %p154, %p155
      %s158 = sadd.s32 %s157, 1
      %p161 = scmp.eq.s32.totalorder %s18, 1
      %p162 = scmp.ne.s32.totalorder %s157, %s159
      %p163 = scmp.eq.s32.totalorder %s18, 0
      %p164 = por %p162, %p163
      %p165 = scmp.ne.s32.totalorder %s157, %s159
      %p166 = scmp.eq.s32.totalorder %s23, 1
      %p167 = por %p165, %p166
      %p168 = scmp.ne.s32.totalorder %s159, %s160
      %p169 = scmp.eq.s32.totalorder %s23, 0
      %p170 = por %p168, %p169
      %p171 = scmp.ne.s32.totalorder %s159, %s160
      %p172 = scmp.eq.s32.totalorder %s24, 1
      %p173 = por %p171, %p172
      %p175 = scmp.ne.s32.totalorder %s160, %s174
      %p176 = scmp.eq.s32.totalorder %s24, 0
      %p177 = por %p175, %p176
      %s178 = ssub.s32 %s18, %s25
      %p179 = scmp.eq.s32.totalorder %s178, 0
      %s181 = sadd.s32 %s180, 1
      %s182 = scalar_select %p179, %s180, %s181
      %p185 = pneg %p179
      %p186 = scmp.eq.s32.totalorder %s18, 1
      %p187 = por %p185, %p186
      %p188 = scmp.ne.s32.totalorder %s180, %s183
      %p189 = scmp.eq.s32.totalorder %s18, 0
      %p190 = por %p188, %p189
      %p191 = scmp.ne.s32.totalorder %s180, %s183
      %p192 = scmp.eq.s32.totalorder %s23, 1
      %p193 = por %p191, %p192
      %p194 = scmp.ne.s32.totalorder %s183, %s184
      %p195 = scmp.eq.s32.totalorder %s23, 0
      %p196 = por %p194, %p195
      %p197 = scmp.ne.s32.totalorder %s183, %s184
      %p198 = scmp.eq.s32.totalorder %s24, 1
      %p199 = por %p197, %p198
      %p201 = scmp.ne.s32.totalorder %s184, %s200
      %p202 = scmp.eq.s32.totalorder %s24, 0
      %p203 = por %p201, %p202
      %p204 = scmp.le.s32.totalorder 1, %s18
      %p205 = scmp.lt.s32.totalorder %s18, 3
      %p206 = pnand %p204, %p205
      %p207 = pneg %p206
      // Predicated region
      $region9: #{tpu_custom_call.1} parent=5 // pred_check
        _
      $region10: #{tpu_custom_call.1} parent=5 // pred_check_branch
        %209 = sbr.rel (%p206) target = $region12
      $region11: #{tpu_custom_call.1} parent=5 // pred_region
        %s210 = ssub.s32 %s18, 1
        // Predicated region
        $region13: #{tpu_custom_call.1} parent=11 // pred_check
          %p211 = pneg %p65
        $region14: #{tpu_custom_call.1} parent=11 // pred_check_branch
          %213 = sbr.rel (%p211) target = $region16
        $region15: #{tpu_custom_call.1} parent=11 // pred_region
          _
        $region16: #{tpu_custom_call.1} parent=11 // pred_fallthru
          _
        // Predicated region
        $region17: #{tpu_custom_call.1} parent=11 // pred_check
          %p214 = pneg %p86
        $region18: #{tpu_custom_call.1} parent=11 // pred_check_branch
          %216 = sbr.rel (%p214) target = $region20
        $region19: #{tpu_custom_call.1} parent=11 // pred_region
          _
        $region20: #{tpu_custom_call.1} parent=11 // pred_fallthru
          _
        // Predicated region
        $region21: #{tpu_custom_call.1} parent=11 // pred_check
          %p217 = pneg %p107
        $region22: #{tpu_custom_call.1} parent=11 // pred_check_branch
          %219 = sbr.rel (%p217) target = $region24
        $region23: #{tpu_custom_call.1} parent=11 // pred_region
          _
        $region24: #{tpu_custom_call.1} parent=11 // pred_fallthru
          _
        // Predicated region
        $region25: #{tpu_custom_call.1} parent=11 // pred_check
          %p220 = pneg %p128
        $region26: #{tpu_custom_call.1} parent=11 // pred_check_branch
          %222 = sbr.rel (%p220) target = $region28
        $region27: #{tpu_custom_call.1} parent=11 // pred_region
          _
        $region28: #{tpu_custom_call.1} parent=11 // pred_fallthru
          _
        // Predicated region
        $region29: #{tpu_custom_call.1} parent=11 // pred_check
          %p223 = pneg %p149
        $region30: #{tpu_custom_call.1} parent=11 // pred_check_branch
          %225 = sbr.rel (%p223) target = $region32
        $region31: #{tpu_custom_call.1} parent=11 // pred_region
          _
        $region32: #{tpu_custom_call.1} parent=11 // pred_fallthru
          _
        // Predicated region
        $region33: #{tpu_custom_call.1} parent=11 // pred_check
          %p226 = pneg %p170
        $region34: #{tpu_custom_call.1} parent=11 // pred_check_branch
          %228 = sbr.rel (%p226) target = $region36
        $region35: #{tpu_custom_call.1} parent=11 // pred_region
          _
        $region36: #{tpu_custom_call.1} parent=11 // pred_fallthru
          _
      $region12: #{tpu_custom_call.1} parent=5 // pred_fallthru
        _
      %p229 = scmp.lt.s32.totalorder %s18, 2
      // Predicated region
      $region37: #{tpu_custom_call.1} parent=5 // pred_check
        %p230 = pneg %p229
      $region38: #{tpu_custom_call.1} parent=5 // pred_check_branch
        %232 = sbr.rel (%p230) target = $region40
      $region39: #{tpu_custom_call.1} parent=5 // pred_region
        // Predicated region
        $region41: #{tpu_custom_call.1} parent=39 // pred_check
          %p233 = pneg %p38
        $region42: #{tpu_custom_call.1} parent=39 // pred_check_branch
          %235 = sbr.rel (%p233) target = $region44
        $region43: #{tpu_custom_call.1} parent=39 // pred_region
          %s236 = smul.u32 4, %s18
          %p237 = scmp.lt.s32.totalorder %s236, 7
          %s238 = scalar_select %p237, %s236, 7
          %s239 = smul.addr %s238, 8
          %s240 = scalar_lea.vmem %s0, %s239
          %s241 = smul.u32 4, %s18
        $region44: #{tpu_custom_call.1} parent=39 // pred_fallthru
          _
      $region40: #{tpu_custom_call.1} parent=5 // pred_fallthru
        _
      %p242 = scmp.le.s32.totalorder 1, %s18
      %p243 = scmp.lt.s32.totalorder %s18, 3
      %p244 = pnand %p242, %p243
      %p245 = pneg %p244
      // Predicated region
      $region45: #{tpu_custom_call.1} parent=5 // pred_check
        _
      $region46: #{tpu_custom_call.1} parent=5 // pred_check_branch
        %247 = sbr.rel (%p244) target = $region48
      $region47: #{tpu_custom_call.1} parent=5 // pred_region
        %s248 = ssub.s32 %s18, 1
        %s249 = smul.u32 4, %s23
        %p250 = scmp.lt.s32.totalorder %s249, 7
        %s251 = scalar_select %p250, %s249, 7
        %s252 = smul.addr %s251, 8
        %s253 = scalar_lea.vmem %s0, %s252
        %p254 = pneg %p44
        %p255 = pneg %p41
        %p256 = pneg %p65
        %p257 = pneg %p62
        %p258 = pneg %p86
        %p259 = pneg %p83
        %p260 = pneg %p107
        %p261 = pneg %p104
        %p262 = pneg %p128
        %p263 = pneg %p125
        %p264 = pneg %p149
        %p265 = pneg %p146
        %p266 = pneg %p170
        %p267 = pneg %p167
        %p268 = pneg %p196
        %p269 = pneg %p193
        %s270 = sand.u32 %s183, 1
        %s271 = scalar_lea.sflag [#allocation4], %s270
        %s272 = sand.u32 %s183, 1
        %s273 = smul.addr %s272, 4
        %s274 = scalar_lea.vmem [#allocation3], %s273
        %s275 = smul.u32 4, %s23
        %p276 = scmp.lt.s32.totalorder %s275, 7
        %s277 = scalar_select %p276, %s275, 7
        %s278 = smul.addr %s277, 8
        %s279 = scalar_lea.vmem %s0, %s278
        %s280 = smul.u32 4, %s23
        %s281 = smul.u32 4, %s23
        %v282 = vld [vmem:[%s279] sm:$0x7f]
        %v283 = vld [vmem:[%s279 + $0x8] sm:$0x7f]
        %v284 = vld [vmem:[%s279 + $0x10] sm:$0x7f]
        %v285 = vld [vmem:[%s279 + $0x18] sm:$0x7f]
        %v286 = vld [vmem:[%s1] sm:$0xff]
        %v287 = vld [vmem:[%s1 + $0x8] sm:$0xff]
        %v288 = vld [vmem:[%s1 + $0x10] sm:$0xff]
        %v289 = vld [vmem:[%s1 + $0x18] sm:$0xff]
        %v290 = vld [vmem:[%s2] sm:$0xff]
        %v291 = vld [vmem:[%s2 + $0x8] sm:$0xff]
        %v292 = vld [vmem:[%s2 + $0x10] sm:$0xff]
        %v293 = vld [vmem:[%s2 + $0x18] sm:$0xff]
        %295 = vset.pattern.permute.xlu0 0
        %296 = vperm.xlu0 %295, %v290
        %v297 = vpop.permute.xlu0 %296
        %300 = vset.pattern.permute.xlu0 0
        %301 = vperm.xlu0 %300, %v291
        %v302 = vpop.permute.xlu0 %301
        %305 = vset.pattern.permute.xlu0 0
        %306 = vperm.xlu0 %305, %v292
        %v307 = vpop.permute.xlu0 %306
        %310 = vset.pattern.permute.xlu0 0
        %311 = vperm.xlu0 %310, %v293
        %v312 = vpop.permute.xlu0 %311
        %vm314 = vcmask 56320
        %v316 = vsel %vm314, %v286, 0
        %v319 = vsel %vm314, %v287, 0
        %v322 = vsel %vm314, %v288, 0
        %v325 = vsel %vm314, %v289, 0
        %vm327 = vcmask 1046528
        %v329 = vsel %vm327, %v282, 0
        %v332 = vsel %vm327, %v283, 0
        %v335 = vsel %vm327, %v284, 0
        %v338 = vsel %vm327, %v285, 0
        %340 = vmatprep.subr.mxu0 %v332
        %341 = vmatpush1.msra.mxu0 %v329
        %342 = vmatprep.subr.mxu0 0.0
        %343 = vmatpush1.msra.mxu0 0.0
        %344 = vmatprep.subr.mxu0 0.0
        %345 = vmatpush1.msra.mxu0 0.0
        %346 = vmatprep.subr.mxu0 0.0
        %347 = vmatpush1.msra.mxu0 0.0
        %348 = vmatprep.subr.mxu0 0.0
        %349 = vmatpush1.msra.mxu0 0.0
        %350 = vmatprep.subr.mxu0 0.0
        %351 = vmatpush1.msra.mxu0 0.0
        %352 = vmatprep.subr.mxu0 0.0
        %353 = vmatpush1.msra.mxu0 0.0
        %354 = vmatprep.subr.mxu0 0.0
        %355 = vmatpush1.msra.mxu0 0.0
        %356 = vmatprep.subr.mxu0 0.0
        %357 = vmatpush1.msra.mxu0 0.0
        %358 = vmatprep.subr.mxu0 0.0
        %359 = vmatpush1.msra.mxu0 0.0
        %360 = vmatprep.subr.mxu0 0.0
        %361 = vmatpush1.msra.mxu0 0.0
        %362 = vmatprep.subr.mxu0 0.0
        %363 = vmatpush1.msra.mxu0 0.0
        %364 = vmatprep.subr.mxu0 0.0
        %365 = vmatpush1.msra.mxu0 0.0
        %366 = vmatprep.subr.mxu0 0.0
        %367 = vmatpush1.msra.mxu0 0.0
        %368 = vmatprep.subr.mxu0 0.0
        %369 = vmatpush1.msra.mxu0 0.0
        %370 = vmatprep.subr.mxu0 0.0
        %371 = vmatpush1.msra.mxu0 0.0
        %372 = vmatprep.subr.mxu0 0.0
        %373 = vmatpush1.msra.mxu0 0.0
        %374 = vmatprep.subr.mxu0 0.0
        %375 = vmatpush1.msra.mxu0 0.0
        %376 = vmatprep.subr.mxu0 0.0
        %377 = vmatpush1.msra.mxu0 0.0
        %378 = vmatprep.subr.mxu0 0.0
        %379 = vmatpush1.msra.mxu0 0.0
        %380 = vmatprep.subr.mxu0 0.0
        %381 = vmatpush1.msra.mxu0 0.0
        %382 = vmatprep.subr.mxu0 0.0
        %383 = vmatpush1.msra.mxu0 0.0
        %384 = vmatprep.subr.mxu0 0.0
        %385 = vmatpush1.msra.mxu0 0.0
        %386 = vmatprep.subr.mxu0 0.0
        %387 = vmatpush1.msra.mxu0 0.0
        %388 = vmatprep.subr.mxu0 0.0
        %389 = vmatpush1.msra.mxu0 0.0
        %390 = vmatprep.subr.mxu0 0.0
        %391 = vmatpush1.msra.mxu0 0.0
        %392 = vmatprep.subr.mxu0 0.0
        %393 = vmatpush1.msra.mxu0 0.0
        %394 = vmatprep.subr.mxu0 0.0
        %395 = vmatpush1.msra.mxu0 0.0
        %396 = vmatprep.subr.mxu0 0.0
        %397 = vmatpush1.msra.mxu0 0.0
        %398 = vmatprep.subr.mxu0 0.0
        %399 = vmatpush1.msra.mxu0 0.0
        %400 = vmatprep.subr.mxu0 0.0
        %401 = vmatpush1.msra.mxu0 0.0
        %402 = vmatprep.subr.mxu0 0.0
        %403 = vmatpush1.msra.mxu0 0.0
        %404 = vmatprep.mubr.f32.mxu0 0.0
        %405 = vmatmul.mubr.f32.gmra.mrb[0].mxu0 %v316
        %v406 = vpop.f32.mrb[0].mxu0
        %v407 = vadd.f32 %v297, %v406
        %v408 = vpop.f32.mrb[0].mxu0
        %v409 = vadd.f32 %v297, %v408
        %410 = vmatprep.mubr.f32.mxu0 0.0
        %411 = vmatmul.mubr.f32.gmra.mrb[0].mxu0 %v319
        %v412 = vpop.f32.mrb[0].mxu0
        %v413 = vadd.f32 %v302, %v412
        %v414 = vpop.f32.mrb[0].mxu0
        %v415 = vadd.f32 %v302, %v414
        %416 = vmatprep.mubr.f32.mxu0 0.0
        %417 = vmatmul.mubr.f32.gmra.mrb[0].mxu0 %v322
        %v418 = vpop.f32.mrb[0].mxu0
        %v419 = vadd.f32 %v307, %v418
        %v420 = vpop.f32.mrb[0].mxu0
        %v421 = vadd.f32 %v307, %v420
        %422 = vmatprep.mubr.f32.mxu0 0.0
        %423 = vmatmul.mubr.f32.gmra.mrb[0].mxu0 %v325
        %v424 = vpop.f32.mrb[0].mxu0
        %v425 = vadd.f32 %v312, %v424
        %v426 = vpop.f32.mrb[0].mxu0
        %v427 = vadd.f32 %v312, %v426
        %428 = vdwg.mxu0
        %429 = vmatprep.subr.mxu0 %v338
        %430 = vmatpush1.msra.mxu0 %v335
        %431 = vmatprep.subr.mxu0 0.0
        %432 = vmatpush1.msra.mxu0 0.0
        %433 = vmatprep.subr.mxu0 0.0
        %434 = vmatpush1.msra.mxu0 0.0
        %435 = vmatprep.subr.mxu0 0.0
        %436 = vmatpush1.msra.mxu0 0.0
        %437 = vmatprep.subr.mxu0 0.0
        %438 = vmatpush1.msra.mxu0 0.0
        %439 = vmatprep.subr.mxu0 0.0
        %440 = vmatpush1.msra.mxu0 0.0
        %441 = vmatprep.subr.mxu0 0.0
        %442 = vmatpush1.msra.mxu0 0.0
        %443 = vmatprep.subr.mxu0 0.0
        %444 = vmatpush1.msra.mxu0 0.0
        %445 = vmatprep.subr.mxu0 0.0
        %446 = vmatpush1.msra.mxu0 0.0
        %447 = vmatprep.subr.mxu0 0.0
        %448 = vmatpush1.msra.mxu0 0.0
        %449 = vmatprep.subr.mxu0 0.0
        %450 = vmatpush1.msra.mxu0 0.0
        %451 = vmatprep.subr.mxu0 0.0
        %452 = vmatpush1.msra.mxu0 0.0
        %453 = vmatprep.subr.mxu0 0.0
        %454 = vmatpush1.msra.mxu0 0.0
        %455 = vmatprep.subr.mxu0 0.0
        %456 = vmatpush1.msra.mxu0 0.0
        %457 = vmatprep.subr.mxu0 0.0
        %458 = vmatpush1.msra.mxu0 0.0
        %459 = vmatprep.subr.mxu0 0.0
        %460 = vmatpush1.msra.mxu0 0.0
        %461 = vmatprep.subr.mxu0 0.0
        %462 = vmatpush1.msra.mxu0 0.0
        %463 = vmatprep.subr.mxu0 0.0
        %464 = vmatpush1.msra.mxu0 0.0
        %465 = vmatprep.subr.mxu0 0.0
        %466 = vmatpush1.msra.mxu0 0.0
        %467 = vmatprep.subr.mxu0 0.0
        %468 = vmatpush1.msra.mxu0 0.0
        %469 = vmatprep.subr.mxu0 0.0
        %470 = vmatpush1.msra.mxu0 0.0
        %471 = vmatprep.subr.mxu0 0.0
        %472 = vmatpush1.msra.mxu0 0.0
        %473 = vmatprep.subr.mxu0 0.0
        %474 = vmatpush1.msra.mxu0 0.0
        %475 = vmatprep.subr.mxu0 0.0
        %476 = vmatpush1.msra.mxu0 0.0
        %477 = vmatprep.subr.mxu0 0.0
        %478 = vmatpush1.msra.mxu0 0.0
        %479 = vmatprep.subr.mxu0 0.0
        %480 = vmatpush1.msra.mxu0 0.0
        %481 = vmatprep.subr.mxu0 0.0
        %482 = vmatpush1.msra.mxu0 0.0
        %483 = vmatprep.subr.mxu0 0.0
        %484 = vmatpush1.msra.mxu0 0.0
        %485 = vmatprep.subr.mxu0 0.0
        %486 = vmatpush1.msra.mxu0 0.0
        %487 = vmatprep.subr.mxu0 0.0
        %488 = vmatpush1.msra.mxu0 0.0
        %489 = vmatprep.subr.mxu0 0.0
        %490 = vmatpush1.msra.mxu0 0.0
        %491 = vmatprep.subr.mxu0 0.0
        %492 = vmatpush1.msra.mxu0 0.0
        %493 = vmatprep.mubr.f32.mxu0 0.0
        %494 = vmatmul.mubr.f32.gmra.mrb[0].mxu0 %v316
        %v495 = vpop.f32.mrb[0].mxu0
        %v496 = vadd.f32 %v297, %v495
        %v497 = vpop.f32.mrb[0].mxu0
        %v498 = vadd.f32 %v297, %v497
        %499 = vmatprep.mubr.f32.mxu0 0.0
        %500 = vmatmul.mubr.f32.gmra.mrb[0].mxu0 %v319
        %v501 = vpop.f32.mrb[0].mxu0
        %v502 = vadd.f32 %v302, %v501
        %v503 = vpop.f32.mrb[0].mxu0
        %v504 = vadd.f32 %v302, %v503
        %505 = vmatprep.mubr.f32.mxu0 0.0
        %506 = vmatmul.mubr.f32.gmra.mrb[0].mxu0 %v322
        %v507 = vpop.f32.mrb[0].mxu0
        %v508 = vadd.f32 %v307, %v507
        %v509 = vpop.f32.mrb[0].mxu0
        %v510 = vadd.f32 %v307, %v509
        %511 = vmatprep.mubr.f32.mxu0 0.0
        %512 = vmatmul.mubr.f32.gmra.mrb[0].mxu0 %v325
        %v513 = vpop.f32.mrb[0].mxu0
        %v514 = vadd.f32 %v312, %v513
        %v515 = vpop.f32.mrb[0].mxu0
        %v516 = vadd.f32 %v312, %v515
        %517 = vdwg.mxu0
        %v518 = vmax.f32 %v407, 0.0
        %v519 = vmax.f32 %v409, 0.0
        %v520 = vmax.f32 %v496, 0.0
        %v521 = vmax.f32 %v498, 0.0
        %v522 = vmax.f32 %v413, 0.0
        %v523 = vmax.f32 %v415, 0.0
        %v524 = vmax.f32 %v502, 0.0
        %v525 = vmax.f32 %v504, 0.0
        %v526 = vmax.f32 %v419, 0.0
        %v527 = vmax.f32 %v421, 0.0
        %v528 = vmax.f32 %v508, 0.0
        %v529 = vmax.f32 %v510, 0.0
        %v530 = vmax.f32 %v425, 0.0
        %v531 = vmax.f32 %v427, 0.0
        %v532 = vmax.f32 %v514, 0.0
        %v533 = vmax.f32 %v516, 0.0
        %v534 = vld [vmem:[%s3] sm:$0xff]
        %v535 = vld [vmem:[%s3 + $0x8] sm:$0xff]
        %v536 = vld [vmem:[%s4] sm:$0xff]
        %v537 = vld [vmem:[%s4 + $0x8] sm:$0xff]
        %539 = vset.pattern.permute.xlu0 0
        %540 = vperm.xlu0 %539, %v536
        %v541 = vpop.permute.xlu0 %540
        %544 = vset.pattern.permute.xlu0 0
        %545 = vperm.xlu0 %544, %v537
        %v546 = vpop.permute.xlu0 %545
        %vm548 = vcmask 261120
        %v550 = vsel %vm548, %v534, 0
        %v553 = vsel %vm548, %v535, 0
        %555 = vmatprep.subr.mxu0 %v519
        %556 = vmatpush1.msra.mxu0 %v518
        %557 = vmatprep.subr.mxu0 %v523
        %558 = vmatpush1.msra.mxu0 %v522
        %559 = vmatprep.subr.mxu0 %v527
        %560 = vmatpush1.msra.mxu0 %v526
        %561 = vmatprep.subr.mxu0 %v531
        %562 = vmatpush1.msra.mxu0 %v530
        %563 = vmatprep.subr.mxu0 0.0
        %564 = vmatpush1.msra.mxu0 0.0
        %565 = vmatprep.subr.mxu0 0.0
        %566 = vmatpush1.msra.mxu0 0.0
        %567 = vmatprep.subr.mxu0 0.0
        %568 = vmatpush1.msra.mxu0 0.0
        %569 = vmatprep.subr.mxu0 0.0
        %570 = vmatpush1.msra.mxu0 0.0
        %571 = vmatprep.subr.mxu0 0.0
        %572 = vmatpush1.msra.mxu0 0.0
        %573 = vmatprep.subr.mxu0 0.0
        %574 = vmatpush1.msra.mxu0 0.0
        %575 = vmatprep.subr.mxu0 0.0
        %576 = vmatpush1.msra.mxu0 0.0
        %577 = vmatprep.subr.mxu0 0.0
        %578 = vmatpush1.msra.mxu0 0.0
        %579 = vmatprep.subr.mxu0 0.0
        %580 = vmatpush1.msra.mxu0 0.0
        %581 = vmatprep.subr.mxu0 0.0
        %582 = vmatpush1.msra.mxu0 0.0
        %583 = vmatprep.subr.mxu0 0.0
        %584 = vmatpush1.msra.mxu0 0.0
        %585 = vmatprep.subr.mxu0 0.0
        %586 = vmatpush1.msra.mxu0 0.0
        %587 = vmatprep.subr.mxu0 0.0
        %588 = vmatpush1.msra.mxu0 0.0
        %589 = vmatprep.subr.mxu0 0.0
        %590 = vmatpush1.msra.mxu0 0.0
        %591 = vmatprep.subr.mxu0 0.0
        %592 = vmatpush1.msra.mxu0 0.0
        %593 = vmatprep.subr.mxu0 0.0
        %594 = vmatpush1.msra.mxu0 0.0
        %595 = vmatprep.subr.mxu0 0.0
        %596 = vmatpush1.msra.mxu0 0.0
        %597 = vmatprep.subr.mxu0 0.0
        %598 = vmatpush1.msra.mxu0 0.0
        %599 = vmatprep.subr.mxu0 0.0
        %600 = vmatpush1.msra.mxu0 0.0
        %601 = vmatprep.subr.mxu0 0.0
        %602 = vmatpush1.msra.mxu0 0.0
        %603 = vmatprep.subr.mxu0 0.0
        %604 = vmatpush1.msra.mxu0 0.0
        %605 = vmatprep.subr.mxu0 0.0
        %606 = vmatpush1.msra.mxu0 0.0
        %607 = vmatprep.subr.mxu0 0.0
        %608 = vmatpush1.msra.mxu0 0.0
        %609 = vmatprep.subr.mxu0 0.0
        %610 = vmatpush1.msra.mxu0 0.0
        %611 = vmatprep.subr.mxu0 0.0
        %612 = vmatpush1.msra.mxu0 0.0
        %613 = vmatprep.subr.mxu0 0.0
        %614 = vmatpush1.msra.mxu0 0.0
        %615 = vmatprep.subr.mxu0 0.0
        %616 = vmatpush1.msra.mxu0 0.0
        %617 = vmatprep.subr.mxu0 0.0
        %618 = vmatpush1.msra.mxu0 0.0
        %619 = vmatprep.mubr.f32.mxu0 0.0
        %620 = vmatmul.mubr.f32.gmra.mrb[0].mxu0 %v550
        %v621 = vpop.f32.mrb[0].mxu0
        %v622 = vadd.f32 %v541, %v621
        %v623 = vpop.f32.mrb[0].mxu0
        %v624 = vadd.f32 %v541, %v623
        %625 = vmatprep.mubr.f32.mxu0 0.0
        %626 = vmatmul.mubr.f32.gmra.mrb[0].mxu0 %v553
        %v627 = vpop.f32.mrb[0].mxu0
        %v628 = vadd.f32 %v546, %v627
        %v629 = vpop.f32.mrb[0].mxu0
        %v630 = vadd.f32 %v546, %v629
        %631 = vdwg.mxu0
        %632 = vmatprep.subr.mxu0 %v521
        %633 = vmatpush1.msra.mxu0 %v520
        %634 = vmatprep.subr.mxu0 %v525
        %635 = vmatpush1.msra.mxu0 %v524
        %636 = vmatprep.subr.mxu0 %v529
        %637 = vmatpush1.msra.mxu0 %v528
        %638 = vmatprep.subr.mxu0 %v533
        %639 = vmatpush1.msra.mxu0 %v532
        %640 = vmatprep.subr.mxu0 0.0
        %641 = vmatpush1.msra.mxu0 0.0
        %642 = vmatprep.subr.mxu0 0.0
        %643 = vmatpush1.msra.mxu0 0.0
        %644 = vmatprep.subr.mxu0 0.0
        %645 = vmatpush1.msra.mxu0 0.0
        %646 = vmatprep.subr.mxu0 0.0
        %647 = vmatpush1.msra.mxu0 0.0
        %648 = vmatprep.subr.mxu0 0.0
        %649 = vmatpush1.msra.mxu0 0.0
        %650 = vmatprep.subr.mxu0 0.0
        %651 = vmatpush1.msra.mxu0 0.0
        %652 = vmatprep.subr.mxu0 0.0
        %653 = vmatpush1.msra.mxu0 0.0
        %654 = vmatprep.subr.mxu0 0.0
        %655 = vmatpush1.msra.mxu0 0.0
        %656 = vmatprep.subr.mxu0 0.0
        %657 = vmatpush1.msra.mxu0 0.0
        %658 = vmatprep.subr.mxu0 0.0
        %659 = vmatpush1.msra.mxu0 0.0
        %660 = vmatprep.subr.mxu0 0.0
        %661 = vmatpush1.msra.mxu0 0.0
        %662 = vmatprep.subr.mxu0 0.0
        %663 = vmatpush1.msra.mxu0 0.0
        %664 = vmatprep.subr.mxu0 0.0
        %665 = vmatpush1.msra.mxu0 0.0
        %666 = vmatprep.subr.mxu0 0.0
        %667 = vmatpush1.msra.mxu0 0.0
        %668 = vmatprep.subr.mxu0 0.0
        %669 = vmatpush1.msra.mxu0 0.0
        %670 = vmatprep.subr.mxu0 0.0
        %671 = vmatpush1.msra.mxu0 0.0
        %672 = vmatprep.subr.mxu0 0.0
        %673 = vmatpush1.msra.mxu0 0.0
        %674 = vmatprep.subr.mxu0 0.0
        %675 = vmatpush1.msra.mxu0 0.0
        %676 = vmatprep.subr.mxu0 0.0
        %677 = vmatpush1.msra.mxu0 0.0
        %678 = vmatprep.subr.mxu0 0.0
        %679 = vmatpush1.msra.mxu0 0.0
        %680 = vmatprep.subr.mxu0 0.0
        %681 = vmatpush1.msra.mxu0 0.0
        %682 = vmatprep.subr.mxu0 0.0
        %683 = vmatpush1.msra.mxu0 0.0
        %684 = vmatprep.subr.mxu0 0.0
        %685 = vmatpush1.msra.mxu0 0.0
        %686 = vmatprep.subr.mxu0 0.0
        %687 = vmatpush1.msra.mxu0 0.0
        %688 = vmatprep.subr.mxu0 0.0
        %689 = vmatpush1.msra.mxu0 0.0
        %690 = vmatprep.subr.mxu0 0.0
        %691 = vmatpush1.msra.mxu0 0.0
        %692 = vmatprep.subr.mxu0 0.0
        %693 = vmatpush1.msra.mxu0 0.0
        %694 = vmatprep.subr.mxu0 0.0
        %695 = vmatpush1.msra.mxu0 0.0
        %696 = vmatprep.mubr.f32.mxu0 0.0
        %697 = vmatmul.mubr.f32.gmra.mrb[0].mxu0 %v550
        %v698 = vpop.f32.mrb[0].mxu0
        %v699 = vadd.f32 %v541, %v698
        %v700 = vpop.f32.mrb[0].mxu0
        %v701 = vadd.f32 %v541, %v700
        %702 = vmatprep.mubr.f32.mxu0 0.0
        %703 = vmatmul.mubr.f32.gmra.mrb[0].mxu0 %v553
        %v704 = vpop.f32.mrb[0].mxu0
        %v705 = vadd.f32 %v546, %v704
        %v706 = vpop.f32.mrb[0].mxu0
        %v707 = vadd.f32 %v546, %v706
        %708 = vdwg.mxu0
        %v709 = vmax.f32 %v622, 0.0
        %v710 = vmax.f32 %v624, 0.0
        %v711 = vmax.f32 %v699, 0.0
        %v712 = vmax.f32 %v701, 0.0
        %v713 = vmax.f32 %v628, 0.0
        %v714 = vmax.f32 %v630, 0.0
        %v715 = vmax.f32 %v705, 0.0
        %v716 = vmax.f32 %v707, 0.0
        %v717 = vld [vmem:[%s5] sm:$0xff]
        %v718 = vld [vmem:[%s5 + $0x8] sm:$0xff]
        %720 = vset.pattern.permute.xlu0 0
        %721 = vperm.xlu0 %720, %v717
        %v722 = vpop.permute.xlu0 %721
        %725 = vset.pattern.permute.xlu0 0
        %726 = vperm.xlu0 %725, %v718
        %v727 = vpop.permute.xlu0 %726
        %v729 = vmul.f32 %v709, %v722
        %v730 = vmul.f32 %v710, %v722
        %v731 = vmul.f32 %v711, %v722
        %v732 = vmul.f32 %v712, %v722
        %v733 = vmul.f32 %v713, %v727
        %v734 = vmul.f32 %v714, %v727
        %v735 = vmul.f32 %v715, %v727
        %v736 = vmul.f32 %v716, %v727
        %v737 = vadd.f32 %v729, %v733
        %v738 = vrot.slane %v737, 4
        %v739 = vadd.f32 %v737, %v738
        %v740 = vrot.slane %v739, 2
        %v741 = vadd.f32 %v739, %v740
        %v742 = vrot.slane %v741, 1
        %v743 = vadd.f32 %v741, %v742
        %v744 = vadd.f32 %v730, %v734
        %v745 = vrot.slane %v744, 4
        %v746 = vadd.f32 %v744, %v745
        %v747 = vrot.slane %v746, 2
        %v748 = vadd.f32 %v746, %v747
        %v749 = vrot.slane %v748, 1
        %v750 = vadd.f32 %v748, %v749
        %v751 = vadd.f32 %v731, %v735
        %v752 = vrot.slane %v751, 4
        %v753 = vadd.f32 %v751, %v752
        %v754 = vrot.slane %v753, 2
        %v755 = vadd.f32 %v753, %v754
        %v756 = vrot.slane %v755, 1
        %v757 = vadd.f32 %v755, %v756
        %v758 = vadd.f32 %v732, %v736
        %v759 = vrot.slane %v758, 4
        %v760 = vadd.f32 %v758, %v759
        %v761 = vrot.slane %v760, 2
        %v762 = vadd.f32 %v760, %v761
        %v763 = vrot.slane %v762, 1
        %v764 = vadd.f32 %v762, %v763
        %v765 = vld [vmem:[#allocation2] sm:$0x1]
        %767 = vset.pattern.permute.xlu0 0
        %768 = vperm.xlu0 %767, %v765
        %v769 = vpop.permute.xlu0 %768
        %v771 = vlaneseq
        %v772 = vshrl.u32 %v771, 7
        %v773 = vsub.s32 0, %v772
        %v774 = vrot.slane %v769, %v773
        %v775 = vadd.f32 %v743, %v774
        %v776 = vadd.f32 %v750, %v774
        %v777 = vadd.f32 %v757, %v774
        %v778 = vadd.f32 %v764, %v774
        %v783 = vcombine.low %v775, %v776
        %v784 = vcombine.low %v777, %v778
        %v786 = vunpack.c.l.s4 1966171168
        %v787 = vunpack.c.0.s8 %v786
        %v788 = vlaneseq
        %v789 = vshrl.u32 %v788, 7
        %v790 = vsub.s32 %v787, %v789
        %v791 = vrot.slane %v783, %v790
        %v793 = vunpack.c.l.s4 1966171168
        %v794 = vunpack.c.0.s8 %v793
        %v795 = vlaneseq
        %v796 = vshrl.u32 %v795, 7
        %v797 = vsub.s32 %v794, %v796
        %v798 = vrot.slane %v784, %v797
        %v799 = vcombine.low %v791, %v798
        %v801 = vunpack.c.l.s4 1966171168
        %v802 = vunpack.c.0.s8 %v801
        %v803 = vlaneseq
        %v804 = vshrl.u32 %v803, 7
        %v805 = vsub.s32 %v802, %v804
        %v806 = vrot.slane %v799, %v805
        %v808 = vlaneseq
        %vm809 = vcmp.ge.s32.totalorder %v808, 0
        %vm810 = vcmp.lt.s32.totalorder %v808, 512
        %vm811 = vmand %vm809, %vm810
        %812 = vst.msk [vmem:[%s274] sm:$0xf] %vm811, %v806
        %s813 = sand.u32 %s183, 1
        %s814 = scalar_lea.sflag [#allocation4], %s813
        %s815 = sand.u32 %s183, 1
        %s816 = smul.addr %s815, 4
        %s817 = scalar_lea.vmem [#allocation3], %s816
        // Predicated region
        $region49: #{tpu_custom_call.1} parent=47 // pred_check
          %p818 = pneg %p193
        $region50: #{tpu_custom_call.1} parent=47 // pred_check_branch
          %820 = sbr.rel (%p818) target = $region52
        $region51: #{tpu_custom_call.1} parent=47 // pred_region
          %s821 = smul.u32 4, %s23
          %s823 = ssub.s32 64, 64
          %824 = vsyncadd %s814, %s823
          %s825 = smul.addr %s821, 16
          %s826 = scalar_lea.hbm %s7, %s825
          %s828 = sshll.u32 %s817, 4
          %s829 = int_to_ptr.vmem [resolvable:$true] %s828
          %831 = dma.vmem_to_hbm [thread:$0]  %s829, 64, %s826, %s814
        $region52: #{tpu_custom_call.1} parent=47 // pred_fallthru
          _
      $region48: #{tpu_custom_call.1} parent=5 // pred_fallthru
        _
      %p832 = scmp.le.s32.totalorder 2, %s18
      // Predicated region
      $region53: #{tpu_custom_call.1} parent=5 // pred_check
        %p833 = pneg %p832
      $region54: #{tpu_custom_call.1} parent=5 // pred_check_branch
        %835 = sbr.rel (%p833) target = $region56
      $region55: #{tpu_custom_call.1} parent=5 // pred_region
        %s836 = ssub.s32 %s18, 2
        // Predicated region
        $region57: #{tpu_custom_call.1} parent=55 // pred_check
          %p837 = pneg %p199
        $region58: #{tpu_custom_call.1} parent=55 // pred_check_branch
          %839 = sbr.rel (%p837) target = $region60
        $region59: #{tpu_custom_call.1} parent=55 // pred_region
          %s840 = sand.u32 %s184, 1
          %s841 = scalar_lea.sflag [#allocation4], %s840
          %s842 = sand.u32 %s184, 1
          %s843 = smul.addr %s842, 4
          %s844 = scalar_lea.vmem [#allocation3], %s843
          %845 = dma.done %s841, 64
        $region60: #{tpu_custom_call.1} parent=55 // pred_fallthru
          _
      $region56: #{tpu_custom_call.1} parent=5 // pred_fallthru
        _
    $region6: #{tpu_custom_call.1} parent=1 // loop_footer
      %s22 = sadd.s32 1, %s18
    $region7: #{tpu_custom_call.1} parent=1 // loop_footer_branch
      %17 = sbr.rel target = $region3
    $region8: #{tpu_custom_call.1} parent=1 // loop_exit
      _
    %846 = vsyncpa [#allocation4], 1
    %s847 = scalar_lea.sflag [#allocation4], 1
    %848 = vsyncpa %s847, 1

</llo_original>
